<compile_context>
chip_gen: v5e
topology: v5e:2x2
jax: 0.10.0
libtpu: 0.0.40
codegen_flags: <defaults>
</compile_context>

<pallas_src>
import functools

import jax
import jax.numpy as jnp
import numpy as np
from jax.experimental import pallas as pl
from jax.experimental.pallas import tpu as pltpu

_MIB = 1024 * 1024


# ----------------------------------------------------------------------------
# Kernels
# ----------------------------------------------------------------------------
def _drop_last_cols_kernel(x_ref, o_ref, *, t_out):
    # Path A (full-T blocks): x_ref [tile_m, T], o_ref [tile_m, t_out].
    # Static slice drops the trailing pad column; one dense store of the
    # full output width.
    o_ref[...] = x_ref[:, :t_out]


def _copy_block_kernel(x_ref, o_ref):
    # Path B (T-tiled blocks of identical shape).  Input column c maps 1:1 to
    # output column c for c < t_out; Pallas masks the padded tail of the last
    # output block on writeback, so a plain copy is correct.
    o_ref[...] = x_ref[...]


# ----------------------------------------------------------------------------
# Helpers
# ----------------------------------------------------------------------------
def _round_down(x, m):
    return max(m, (x // m) * m)


def _vmem_budget_bytes():
    """Generation-aware VMEM budget (v5e/v6e: 128 MiB, v7x: 64 MiB per TC)."""
    try:
        info = pltpu.get_tpu_info()
        cap = int(getattr(info, "vmem_capacity_bytes", 64 * _MIB))
    except Exception:
        cap = 64 * _MIB
    vmem_limit = min(cap // 2, 64 * _MIB)          # 64 MiB (v5e/v6e), 32 MiB (v7x)
    block_bytes = min(vmem_limit // 5, 8 * _MIB)   # ~8 MiB (v5e/v6e), ~6.4 MiB (v7x)
    return vmem_limit, block_bytes


# ----------------------------------------------------------------------------
# Wrapper
# ----------------------------------------------------------------------------
def mm_same_pad(hidden_states, num_conv_pos_embeddings, *, prefer_fusion=False):
    """Pallas implementation of MMSamePadLayer.forward.

    hidden_states: [B, C, T]  (PyTorch Conv1d NCW layout).
    """
    num_pad_remove = 1 if num_conv_pos_embeddings % 2 == 0 else 0
    if num_pad_remove == 0:
        return hidden_states                      # identity — no kernel at all

    B, C, T = hidden_states.shape
    t_out = T - num_pad_remove
    M = B * C

    # Degenerate shapes (empty batch / zero-width output): plain XLA slice.
    if M == 0 or t_out <= 0:
        return hidden_states[:, :, :max(t_out, 0)]

    if prefer_fusion:
        # Production answer: let XLA fuse the slice into its neighbors.
        return hidden_states[:, :, :t_out]

    dtype = hidden_states.dtype
    itemsize = jnp.dtype(dtype).itemsize
    sublane = max(8, 32 // max(1, itemsize))      # 8 (f32) / 16 (bf16) / 32 (int8)

    vmem_limit_bytes, target_block_bytes = _vmem_budget_bytes()
    x2d = hidden_states.reshape(M, T)
    bytes_accessed = (M * T + M * t_out) * itemsize

    row_bytes = T * itemsize
    full_t_fits = sublane * row_bytes <= target_block_bytes

    if full_t_fits:
        # ---- Path A: full-T blocks, tile only the flattened (B*C) axis. ----
        tile_m = max(1, target_block_bytes // row_bytes)
        tile_m = min(tile_m, M)
        tile_m = _round_down(tile_m, sublane)
        # Guarantee >= 2 grid steps so v7x's two TensorCores both get work.
        num_m = -(-M // tile_m)
        while num_m < 2 and tile_m > sublane:
            tile_m = _round_down(tile_m // 2, sublane)
            num_m = -(-M // tile_m)

        kern = functools.partial(_drop_last_cols_kernel, t_out=t_out)
        out2d = pl.pallas_call(
            kern,
            out_shape=jax.ShapeDtypeStruct((M, t_out), dtype),
            grid=(num_m,),
            in_specs=[pl.BlockSpec((tile_m, T), lambda i: (i, 0))],
            out_specs=pl.BlockSpec((tile_m, t_out), lambda i: (i, 0)),
            compiler_params=pltpu.CompilerParams(
                dimension_semantics=("parallel",),
                vmem_limit_bytes=vmem_limit_bytes,
            ),
            cost_estimate=pl.CostEstimate(
                flops=0, transcendentals=0, bytes_accessed=bytes_accessed),
        )(x2d)
    else:
        # ---- Path B: very long T — tile both axes (tile_t multiple of 128). --
        tile_t = _round_down(target_block_bytes // (sublane * itemsize), 128)
        tile_t = min(tile_t, _round_down(T, 128))
        tile_m = _round_down(min(M, target_block_bytes // (tile_t * itemsize)),
                             sublane)
        num_m = -(-M // tile_m)
        # Only output columns [0, t_out) need producing; input block j always
        # covers all columns its output block needs.
        num_t = -(-t_out // tile_t)

        out2d = pl.pallas_call(
            _copy_block_kernel,
            out_shape=jax.ShapeDtypeStruct((M, t_out), dtype),
            grid=(num_m, num_t),
            in_specs=[pl.BlockSpec((tile_m, tile_t), lambda i, j: (i, j))],
            out_specs=pl.BlockSpec((tile_m, tile_t), lambda i, j: (i, j)),
            compiler_params=pltpu.CompilerParams(
                dimension_semantics=("parallel", "parallel"),
                vmem_limit_bytes=vmem_limit_bytes,
            ),
            cost_estimate=pl.CostEstimate(
                flops=0, transcendentals=0, bytes_accessed=bytes_accessed),
        )(x2d)

    return out2d.reshape(B, C, t_out)


# ----------------------------------------------------------------------------
# Pure-JAX reference (for correctness check)
# ----------------------------------------------------------------------------
def reference_same_pad(hidden_states, num_conv_pos_embeddings):
    num_pad_remove = 1 if num_conv_pos_embeddings % 2 == 0 else 0
    if num_pad_remove > 0:
        hidden_states = hidden_states[:, :, :-num_pad_remove]
    return hidden_states


if __name__ == "__main__":
    key = jax.random.PRNGKey(0)
    B, C, T = 2, 32, 16
    x = jax.random.normal(key, (B, C, T), dtype=jnp.float32)

    # Even num_conv_pos_embeddings -> drop the last time step (Pallas kernel).
    out = jax.block_until_ready(mm_same_pad(x, 128))
    ref = reference_same_pad(x, 128)
    assert out.shape == (B, C, T - 1), out.shape
    np.testing.assert_array_equal(np.asarray(out), np.asarray(ref))

    # bf16 exercises the dtype-dependent sublane multiple (16).
    xb = x.astype(jnp.bfloat16)
    out_b = jax.block_until_ready(mm_same_pad(xb, 16))
    np.testing.assert_array_equal(np.asarray(out_b), np.asarray(xb[:, :, :-1]))

    # Odd -> identity, no kernel launch.
    out_odd = jax.block_until_ready(mm_same_pad(x, 129))
    np.testing.assert_array_equal(np.asarray(out_odd), np.asarray(x))

    # Degenerate: T == 1 with even count -> zero-width output, no kernel.
    tiny = jnp.ones((2, 3, 1), jnp.float32)
    out_tiny = jax.block_until_ready(mm_same_pad(tiny, 2))
    assert out_tiny.shape == (2, 3, 0), out_tiny.shape

    print("KERNEL_OK")
</pallas_src>

<mosaic_0001>
module attributes {stable_mosaic.version = 11 : i64} {
  func.func @_drop_last_cols_kernel(%arg0: i32, %arg1: memref<32x16xf32, #tpu.memory_space<vmem>>, %arg2: memref<32x15xf32, #tpu.memory_space<vmem>>) attributes {dimension_semantics = [#tpu.dimension_semantics<parallel>], iteration_bounds = array<i64: 2>, scalar_prefetch = 0 : i64, scratch_operands = 0 : i64, tpu.core_type = #tpu.core_type<tc>, window_params = [{transform_indices = @transform_0, window_bounds = array<i64: 32, 16>}, {transform_indices = @transform_1, window_bounds = array<i64: 32, 15>}]} {
    %c0 = arith.constant 0 : index
    %c0_0 = arith.constant 0 : index
    %0 = vector.load %arg1[%c0, %c0_0] : memref<32x16xf32, #tpu.memory_space<vmem>>, vector<32x15xf32>
    %c0_1 = arith.constant 0 : index
    %c0_2 = arith.constant 0 : index
    %1 = vector.load %arg2[%c0_1, %c0_2] : memref<32x15xf32, #tpu.memory_space<vmem>>, vector<32x15xf32>
    tpu.vector_store %arg2[%c0_1, %c0_2], %0 {strides = array<i32>} : memref<32x15xf32, #tpu.memory_space<vmem>>, vector<32x15xf32>,
    return
  }
  func.func @transform_0(%arg0: i32) -> (i32, i32) {
    %c0_i32 = arith.constant 0 : i32
    %c0_i32_0 = arith.constant 0 : i32
    return %arg0, %c0_i32 : i32, i32
  }
  func.func @transform_1(%arg0: i32) -> (i32, i32) {
    %c0_i32 = arith.constant 0 : i32
    %c0_i32_0 = arith.constant 0 : i32
    return %arg0, %c0_i32 : i32, i32
  }
}

</mosaic_0001>

<llo_original>
// kernel: tpu_custom_call.1
$region0: #{tpu_custom_call.1}
  #allocation0 [shape = 'u32[]', space=smem, size = 0x4, offset = 0x4, fixed_abs, tag = 'smem constant byte address 0x4 - core index']
  #allocation1 [shape = 'u32[72,128]{1,0:T(1,128)}', space=vmem, size = 0x9000, scoped, tag = 'internal scratch']
  %s0 = inlined_call_operand.vmem [shape: f32[64,16], index: 0, kind: input, shape index: {}]
  %s1 = inlined_call_operand.vmem [shape: f32[64,15], index: 1, kind: output, shape index: {}]
  %s2 = sld [smem:[#allocation0]]
  $region37: #{tpu_custom_call.1} parent=0
    _
  %s4 = ssub.s32 1, %s2
  %s5 = scalar_select 0, %s4, %s2
  loop: start=0, step=1, limit=4
  $region2: #{tpu_custom_call.1} parent=0 // loop_pre_header
    _
  $region3: #{tpu_custom_call.1} parent=0 // loop_header
    %s7 = sphi 0, %s11
    %p8 = scmp.ge.s32.totalorder %s7, 4
    %s17 = sphi 0, %s19
    %s20 = sphi 0, %s17
    %s21 = sphi 0, %s20
    %s37 = sphi 0, %s21
    %s43 = sphi 0, %s45
    %s46 = sphi 0, %s43
    %s47 = sphi 0, %s46
    %s63 = sphi 0, %s47
  $region4: #{tpu_custom_call.1} parent=0 // loop_header_branch
    %10 = sbr.rel (%p8) target = $region8
  $region5: #{tpu_custom_call.1} parent=0 // loop_body
    %s12 = ssub.s32 %s7, 1
    %s13 = ssub.s32 %s7, 2
    %s14 = sadd.s32 %s7, 1
    %s15 = ssub.s32 %s7, %s14
    %p16 = scmp.eq.s32.totalorder %s15, 0
    %s18 = sadd.s32 %s17, 1
    %s19 = scalar_select %p16, %s17, %s18
    %p22 = pneg %p16
    %p23 = scmp.eq.s32.totalorder %s7, 1
    %p24 = por %p22, %p23
    %p25 = scmp.ne.s32.totalorder %s17, %s20
    %p26 = scmp.eq.s32.totalorder %s7, 0
    %p27 = por %p25, %p26
    %p28 = scmp.ne.s32.totalorder %s17, %s20
    %p29 = scmp.eq.s32.totalorder %s12, 1
    %p30 = por %p28, %p29
    %p31 = scmp.ne.s32.totalorder %s20, %s21
    %p32 = scmp.eq.s32.totalorder %s12, 0
    %p33 = por %p31, %p32
    %p34 = scmp.ne.s32.totalorder %s20, %s21
    %p35 = scmp.eq.s32.totalorder %s13, 1
    %p36 = por %p34, %p35
    %p38 = scmp.ne.s32.totalorder %s21, %s37
    %p39 = scmp.eq.s32.totalorder %s13, 0
    %p40 = por %p38, %p39
    %s41 = ssub.s32 %s7, %s14
    %p42 = scmp.eq.s32.totalorder %s41, 0
    %s44 = sadd.s32 %s43, 1
    %s45 = scalar_select %p42, %s43, %s44
    %p48 = pneg %p42
    %p49 = scmp.eq.s32.totalorder %s7, 1
    %p50 = por %p48, %p49
    %p51 = scmp.ne.s32.totalorder %s43, %s46
    %p52 = scmp.eq.s32.totalorder %s7, 0
    %p53 = por %p51, %p52
    %p54 = scmp.ne.s32.totalorder %s43, %s46
    %p55 = scmp.eq.s32.totalorder %s12, 1
    %p56 = por %p54, %p55
    %p57 = scmp.ne.s32.totalorder %s46, %s47
    %p58 = scmp.eq.s32.totalorder %s12, 0
    %p59 = por %p57, %p58
    %p60 = scmp.ne.s32.totalorder %s46, %s47
    %p61 = scmp.eq.s32.totalorder %s13, 1
    %p62 = por %p60, %p61
    %p64 = scmp.ne.s32.totalorder %s47, %s63
    %p65 = scmp.eq.s32.totalorder %s13, 0
    %p66 = por %p64, %p65
    %p67 = scmp.le.s32.totalorder 1, %s7
    %p68 = scmp.lt.s32.totalorder %s7, 3
    %p69 = pnand %p67, %p68
    %p70 = pneg %p69
    // Predicated region
    $region9: #{tpu_custom_call.1} parent=5 // pred_check
      _
    $region10: #{tpu_custom_call.1} parent=5 // pred_check_branch
      %72 = sbr.rel (%p69) target = $region12
    $region11: #{tpu_custom_call.1} parent=5 // pred_region
      %s73 = ssub.s32 %s7, 1
    $region12: #{tpu_custom_call.1} parent=5 // pred_fallthru
      _
    %p74 = scmp.lt.s32.totalorder %s7, 2
    // Predicated region
    $region13: #{tpu_custom_call.1} parent=5 // pred_check
      %p75 = pneg %p74
    $region14: #{tpu_custom_call.1} parent=5 // pred_check_branch
      %77 = sbr.rel (%p75) target = $region16
    $region15: #{tpu_custom_call.1} parent=5 // pred_region
      // Predicated region
      $region17: #{tpu_custom_call.1} parent=15 // pred_check
        %p78 = pneg %p27
      $region18: #{tpu_custom_call.1} parent=15 // pred_check_branch
        %80 = sbr.rel (%p78) target = $region20
      $region19: #{tpu_custom_call.1} parent=15 // pred_region
        %s81 = smul.u32 4, %s7
        %p82 = scmp.lt.s32.totalorder %s81, 7
        %s83 = scalar_select %p82, %s81, 7
        %s84 = smul.addr %s83, 8
        %s85 = scalar_lea.vmem %s0, %s84
        %s86 = smul.u32 4, %s7
      $region20: #{tpu_custom_call.1} parent=15 // pred_fallthru
        _
    $region16: #{tpu_custom_call.1} parent=5 // pred_fallthru
      _
    %p87 = scmp.le.s32.totalorder 1, %s7
    %p88 = scmp.lt.s32.totalorder %s7, 3
    %p89 = pnand %p87, %p88
    %p90 = pneg %p89
    // Predicated region
    $region21: #{tpu_custom_call.1} parent=5 // pred_check
      _
    $region22: #{tpu_custom_call.1} parent=5 // pred_check_branch
      %92 = sbr.rel (%p89) target = $region24
    $region23: #{tpu_custom_call.1} parent=5 // pred_region
      %s93 = ssub.s32 %s7, 1
      %s94 = smul.u32 4, %s12
      %p95 = scmp.lt.s32.totalorder %s94, 7
      %s96 = scalar_select %p95, %s94, 7
      %s97 = smul.addr %s96, 8
      %s98 = scalar_lea.vmem %s0, %s97
      %p99 = pneg %p33
      %p100 = pneg %p30
      %p101 = pneg %p59
      %p102 = pneg %p56
      %s103 = smul.u32 4, %s12
      %p104 = scmp.lt.s32.totalorder %s103, 7
      %s105 = scalar_select %p104, %s103, 7
      %s106 = smul.addr %s105, 8
      %s107 = scalar_lea.vmem %s1, %s106
      %s108 = smul.u32 4, %s12
      %p109 = scmp.lt.s32.totalorder %s108, 7
      %s110 = scalar_select %p109, %s108, 7
      %s111 = smul.addr %s110, 8
      %s112 = scalar_lea.vmem %s0, %s111
      %s113 = smul.u32 4, %s12
      %s114 = smul.u32 4, %s12
      %p115 = scmp.lt.s32.totalorder %s114, 7
      %s116 = scalar_select %p115, %s114, 7
      %s117 = smul.addr %s116, 8
      %s118 = scalar_lea.vmem %s1, %s117
      %s119 = smul.u32 4, %s12
      %v120 = vld [vmem:[%s112] sm:$0xff]
      %v121 = vld [vmem:[%s112 + $0x8] sm:$0xff]
      %v122 = vld [vmem:[%s112 + $0x10] sm:$0xff]
      %v123 = vld [vmem:[%s112 + $0x18] sm:$0xff]
      %vm124 = vcmask 121856
      %125 = vst.msk [vmem:[%s118] sm:$0xff] %vm124, %v120
      %126 = vst.msk [vmem:[%s118 + $0x8] sm:$0xff] %vm124, %v121
      %127 = vst.msk [vmem:[%s118 + $0x10] sm:$0xff] %vm124, %v122
      %128 = vst.msk [vmem:[%s118 + $0x18] sm:$0xff] %vm124, %v123
      %s129 = smul.u32 4, %s12
      %p130 = scmp.lt.s32.totalorder %s129, 7
      %s131 = scalar_select %p130, %s129, 7
      %s132 = smul.addr %s131, 8
      %s133 = scalar_lea.vmem %s1, %s132
      // Predicated region
      $region25: #{tpu_custom_call.1} parent=23 // pred_check
        %p134 = pneg %p56
      $region26: #{tpu_custom_call.1} parent=23 // pred_check_branch
        %136 = sbr.rel (%p134) target = $region28
      $region27: #{tpu_custom_call.1} parent=23 // pred_region
        %s137 = smul.u32 4, %s12
      $region28: #{tpu_custom_call.1} parent=23 // pred_fallthru
        _
    $region24: #{tpu_custom_call.1} parent=5 // pred_fallthru
      _
    %p138 = scmp.le.s32.totalorder 2, %s7
    // Predicated region
    $region29: #{tpu_custom_call.1} parent=5 // pred_check
      %p139 = pneg %p138
    $region30: #{tpu_custom_call.1} parent=5 // pred_check_branch
      %141 = sbr.rel (%p139) target = $region32
    $region31: #{tpu_custom_call.1} parent=5 // pred_region
      %s142 = ssub.s32 %s7, 2
      // Predicated region
      $region33: #{tpu_custom_call.1} parent=31 // pred_check
        %p143 = pneg %p62
      $region34: #{tpu_custom_call.1} parent=31 // pred_check_branch
        %145 = sbr.rel (%p143) target = $region36
      $region35: #{tpu_custom_call.1} parent=31 // pred_region
        %s146 = smul.u32 4, %s13
        %p147 = scmp.lt.s32.totalorder %s146, 7
        %s148 = scalar_select %p147, %s146, 7
        %s149 = smul.addr %s148, 8
        %s150 = scalar_lea.vmem %s1, %s149
      $region36: #{tpu_custom_call.1} parent=31 // pred_fallthru
        _
    $region32: #{tpu_custom_call.1} parent=5 // pred_fallthru
      _
  $region6: #{tpu_custom_call.1} parent=0 // loop_footer
    %s11 = sadd.s32 1, %s7
  $region7: #{tpu_custom_call.1} parent=0 // loop_footer_branch
    %6 = sbr.rel target = $region3
  $region8: #{tpu_custom_call.1} parent=0 // loop_exit
    _

</llo_original>
